<compile_context>
chip_gen: v7x
topology: tpu7x:2x2x1
jax: 0.10.0
libtpu: 0.0.40
codegen_flags: <defaults>
</compile_context>

<pallas_src>
import jax
import jax.numpy as jnp
from jax.experimental import pallas as pl
from jax.experimental.pallas import tpu as pltpu


def molr_gnn_kernel(a_ref, x_ref, w0_ref, b0_ref, w1_ref, b1_ref, out_ref):
    """Fused 2-layer GCN + sum-pooling readout for a block of graphs.

    Per graph g in the block:
      h0 = relu((A_hat @ X ) @ W0 + b0)      # aggregate at width F, then lift
      h1 =      (A_hat @ h0) @ W1 + b1       # aggregate at width H, project
      out[g] = sum_atoms(h1)                 # sum pooling (sublane reduce)
    """
    a = a_ref[...]          # (gpb, n, n) bf16
    x = x_ref[...]          # (gpb, n, F) bf16

    # Layer 0: neighborhood aggregation first (narrow width F), then lift.
    agg0 = jnp.einsum("gij,gjf->gif", a, x,
                      preferred_element_type=jnp.float32)
    h0 = jnp.einsum("gnf,fh->gnh", agg0.astype(jnp.bfloat16), w0_ref[...],
                    preferred_element_type=jnp.float32)
    h0 = jnp.maximum(h0 + b0_ref[...], 0.0)            # f32 bias + ReLU

    # Layer 1: aggregate then project (no activation: final GNN layer).
    agg1 = jnp.einsum("gij,gjh->gih", a, h0.astype(jnp.bfloat16),
                      preferred_element_type=jnp.float32)
    h1 = jnp.einsum("gnh,hd->gnd", agg1.astype(jnp.bfloat16), w1_ref[...],
                    preferred_element_type=jnp.float32)
    h1 = h1 + b1_ref[...]

    # Sum pooling over atoms per graph -> lane-dense (gpb, D_out) slab.
    out_ref[...] = jnp.sum(h1, axis=1)


def molr_forward(a_bd, x, w0, b0, w1, b1, *, graphs_per_block):
    """a_bd: [G, n, n] per-graph normalized adjacency, x: [G, n, F] features."""
    n_graphs, n_nodes, feat_dim = x.shape
    hidden = w0.shape[1]
    d_out = w1.shape[1]
    gpb = graphs_per_block
    assert n_graphs % gpb == 0
    grid = (n_graphs // gpb,)

    # bf16 matmul operands (halves HBM/VMEM traffic); f32 accumulation inside.
    a_bf = a_bd.astype(jnp.bfloat16)
    x_bf = x.astype(jnp.bfloat16)
    w0_bf = w0.astype(jnp.bfloat16)
    w1_bf = w1.astype(jnp.bfloat16)
    b0_f32 = b0.astype(jnp.float32)
    b1_f32 = b1.astype(jnp.float32)

    return pl.pallas_call(
        molr_gnn_kernel,
        out_shape=jax.ShapeDtypeStruct((n_graphs, d_out), jnp.float32),
        grid_spec=pltpu.PrefetchScalarGridSpec(
            num_scalar_prefetch=0,
            grid=grid,
            in_specs=[
                # Per-graph-block streams.
                pl.BlockSpec((gpb, n_nodes, n_nodes), lambda gb: (gb, 0, 0)),
                pl.BlockSpec((gpb, n_nodes, feat_dim), lambda gb: (gb, 0, 0)),
                # Weights/biases: constant index_map -> resident across steps.
                pl.BlockSpec((feat_dim, hidden), lambda gb: (0, 0)),
                pl.BlockSpec((1, hidden), lambda gb: (0, 0)),
                pl.BlockSpec((hidden, d_out), lambda gb: (0, 0)),
                pl.BlockSpec((1, d_out), lambda gb: (0, 0)),
            ],
            out_specs=pl.BlockSpec((gpb, d_out), lambda gb: (gb, 0)),
        ),
        compiler_params=pltpu.CompilerParams(
            dimension_semantics=("parallel",),       # v7x: split graphs over TCs
            vmem_limit_bytes=48 * 1024 * 1024,        # explicit budget (v7x 64 MiB)
        ),
    )(a_bf, x_bf, w0_bf, b0_f32, w1_bf, b1_f32)


def build_synthetic_graph_batch(key, n_graphs, nodes_per_graph, feat_dim,
                                n_atom_types=16):
    """Glue (plain JAX): synthetic molecular-graph batch.

    Stands in for SMILES -> graph conversion: each "molecule" is a ring of
    atoms; node features come from an atom-type embedding table; adjacency is
    symmetric-normalized (A + I).  Stored batched per graph ([G, n, n]) so the
    kernel never sees the dense block-diagonal [N, N] matrix.
    """
    n = nodes_per_graph
    idx = jnp.arange(n)
    adj = jnp.zeros((n, n), dtype=jnp.float32)
    adj = adj.at[idx, (idx + 1) % n].set(1.0)
    adj = adj.at[(idx + 1) % n, idx].set(1.0)
    adj = adj + jnp.eye(n, dtype=jnp.float32)           # self loops
    deg = jnp.sum(adj, axis=1)
    d_inv_sqrt = 1.0 / jnp.sqrt(deg)
    a_hat = adj * d_inv_sqrt[:, None] * d_inv_sqrt[None, :]   # D^-1/2 A D^-1/2
    a_bd = jnp.broadcast_to(a_hat, (n_graphs, n, n))

    # Atom-type ids -> embedding-table lookup (node features).
    k_ids, k_emb = jax.random.split(key)
    atom_ids = jax.random.randint(k_ids, (n_graphs, n), 0, n_atom_types)
    emb_table = jax.random.normal(k_emb, (n_atom_types, feat_dim),
                                  dtype=jnp.float32) * 0.1
    x = emb_table[atom_ids]                              # (G, n, F)
    return a_bd, x


def _reference_bf16(a_bd, x, w0, b0, w1, b1):
    """Pure-JAX reference with the same bf16-matmul / f32-accumulate recipe."""
    a = a_bd.astype(jnp.bfloat16)
    xb = x.astype(jnp.bfloat16)
    agg0 = jnp.einsum("gij,gjf->gif", a, xb, preferred_element_type=jnp.float32)
    h0 = jnp.einsum("gnf,fh->gnh", agg0.astype(jnp.bfloat16),
                    w0.astype(jnp.bfloat16), preferred_element_type=jnp.float32)
    h0 = jnp.maximum(h0 + b0, 0.0)
    agg1 = jnp.einsum("gij,gjh->gih", a, h0.astype(jnp.bfloat16),
                      preferred_element_type=jnp.float32)
    h1 = jnp.einsum("gnh,hd->gnd", agg1.astype(jnp.bfloat16),
                    w1.astype(jnp.bfloat16), preferred_element_type=jnp.float32)
    h1 = h1 + b1
    return jnp.sum(h1, axis=1)


def _reference_f32(a_bd, x, w0, b0, w1, b1):
    """Full-precision GCN reference (original association)."""
    h0 = jnp.maximum(jnp.einsum("gij,gjf->gif", a_bd, x @ w0) + b0, 0.0)
    h1 = jnp.einsum("gij,gjh->gih", a_bd, h0 @ w1) + b1
    return jnp.sum(h1, axis=1)


if __name__ == "__main__":
    # Small shapes (1024-dim pretrained output shrunk to 128 for the demo).
    N_GRAPHS = 16          # molecules in the batch
    NODES_PER_GRAPH = 8    # atoms per molecule
    FEAT_DIM = 32          # atom-embedding dim
    HIDDEN = 128           # GNN hidden dim
    D_OUT = 128            # embedding dim (stand-in for 1024)
    GRAPHS_PER_BLOCK = 8   # graphs per grid step (sublane-dense output slab)

    key = jax.random.PRNGKey(0)
    k_graph, k_w0, k_b0, k_w1, k_b1 = jax.random.split(key, 5)

    a_bd, x = build_synthetic_graph_batch(
        k_graph, N_GRAPHS, NODES_PER_GRAPH, FEAT_DIM)

    # Deterministic synthetic GNN weights (Glorot-ish scaling).
    w0 = jax.random.normal(k_w0, (FEAT_DIM, HIDDEN), dtype=jnp.float32)
    w0 = w0 * (1.0 / jnp.sqrt(FEAT_DIM))
    b0 = jax.random.normal(k_b0, (1, HIDDEN), dtype=jnp.float32) * 0.01
    w1 = jax.random.normal(k_w1, (HIDDEN, D_OUT), dtype=jnp.float32)
    w1 = w1 * (1.0 / jnp.sqrt(HIDDEN))
    b1 = jax.random.normal(k_b1, (1, D_OUT), dtype=jnp.float32) * 0.01

    out = molr_forward(a_bd, x, w0, b0, w1, b1,
                       graphs_per_block=GRAPHS_PER_BLOCK)
    out = jax.block_until_ready(out)
    assert out.shape == (N_GRAPHS, D_OUT)

    # Tight check against a reference that uses the same bf16/f32 recipe.
    ref_bf16 = _reference_bf16(a_bd, x, w0, b0, w1, b1)
    assert jnp.allclose(out, ref_bf16, atol=2e-3, rtol=2e-3)

    # Loose sanity check against the full-f32 GCN math.
    ref_f32 = _reference_f32(a_bd, x, w0, b0, w1, b1)
    assert jnp.allclose(out, ref_f32, atol=3e-2, rtol=5e-2)

    print("KERNEL_OK")
</pallas_src>

<mosaic_0001>
module attributes {stable_mosaic.version = 11 : i64} {
  func.func @molr_gnn_kernel(%arg0: i32, %arg1: memref<8x8x8xbf16, #tpu.memory_space<vmem>>, %arg2: memref<8x8x32xbf16, #tpu.memory_space<vmem>>, %arg3: memref<32x128xbf16, #tpu.memory_space<vmem>>, %arg4: memref<1x128xf32, #tpu.memory_space<vmem>>, %arg5: memref<128x128xbf16, #tpu.memory_space<vmem>>, %arg6: memref<1x128xf32, #tpu.memory_space<vmem>>, %arg7: memref<8x128xf32, #tpu.memory_space<vmem>>) attributes {dimension_semantics = [#tpu.dimension_semantics<parallel>], iteration_bounds = array<i64: 2>, scalar_prefetch = 0 : i64, scratch_operands = 0 : i64, tpu.core_type = #tpu.core_type<tc>, window_params = [{transform_indices = @transform_0, window_bounds = array<i64: 8, 8, 8>}, {transform_indices = @transform_1, window_bounds = array<i64: 8, 8, 32>}, {pipeline_mode = #tpu.pipeline_mode<synchronous>, transform_indices = @transform_2, window_bounds = array<i64: 32, 128>}, {pipeline_mode = #tpu.pipeline_mode<synchronous>, transform_indices = @transform_3, window_bounds = array<i64: 1, 128>}, {pipeline_mode = #tpu.pipeline_mode<synchronous>, transform_indices = @transform_4, window_bounds = array<i64: 128, 128>}, {pipeline_mode = #tpu.pipeline_mode<synchronous>, transform_indices = @transform_5, window_bounds = array<i64: 1, 128>}, {transform_indices = @transform_6, window_bounds = array<i64: 8, 128>}]} {
    %c0 = arith.constant 0 : index
    %c0_0 = arith.constant 0 : index
    %c0_1 = arith.constant 0 : index
    %0 = vector.load %arg1[%c0, %c0_0, %c0_1] : memref<8x8x8xbf16, #tpu.memory_space<vmem>>, vector<8x8x8xbf16>
    %c0_2 = arith.constant 0 : index
    %c0_3 = arith.constant 0 : index
    %c0_4 = arith.constant 0 : index
    %1 = vector.load %arg2[%c0_2, %c0_3, %c0_4] : memref<8x8x32xbf16, #tpu.memory_space<vmem>>, vector<8x8x32xbf16>
    "tpu.trace_start"() <{level = 10 : i32, message = "gij,gjf->gif"}> : () -> ()
    %cst = arith.constant dense<0.000000e+00> : vector<8x8x32xf32>
    %2 = tpu.matmul %0, %1, %cst {dimension_numbers = #tpu.dot_dimension_numbers<[2], [1], [1], [2], [0, 0, 0, 1, 1, 2], [0], [0]>} : vector<8x8x8xbf16>, vector<8x8x32xbf16>, vector<8x8x32xf32> -> vector<8x8x32xf32>
    "tpu.trace_stop"() : () -> ()
    %3 = arith.truncf %2 : vector<8x8x32xf32> to vector<8x8x32xbf16>
    %c0_5 = arith.constant 0 : index
    %c0_6 = arith.constant 0 : index
    %4 = vector.load %arg3[%c0_5, %c0_6] : memref<32x128xbf16, #tpu.memory_space<vmem>>, vector<32x128xbf16>
    "tpu.trace_start"() <{level = 10 : i32, message = "gnf,fh->gnh"}> : () -> ()
    %cst_7 = arith.constant dense<0.000000e+00> : vector<8x8x128xf32>
    %5 = tpu.matmul %3, %4, %cst_7 {dimension_numbers = #tpu.dot_dimension_numbers<[2], [0], [0, 1], [1], [0, 0, 0, 1, 1, 1], [], []>} : vector<8x8x32xbf16>, vector<32x128xbf16>, vector<8x8x128xf32> -> vector<8x8x128xf32>
    "tpu.trace_stop"() : () -> ()
    %c0_8 = arith.constant 0 : index
    %c0_9 = arith.constant 0 : index
    %6 = vector.load %arg4[%c0_8, %c0_9] : memref<1x128xf32, #tpu.memory_space<vmem>>, vector<1x128xf32>
    %7 = vector.shape_cast %6 : vector<1x128xf32> to vector<1x1x128xf32>
    %8 = vector.broadcast %7 : vector<1x1x128xf32> to vector<8x8x128xf32>
    %9 = arith.addf %5, %8 : vector<8x8x128xf32>
    %cst_10 = arith.constant 0.000000e+00 : f32
    %10 = vector.broadcast %cst_10 : f32 to vector<8x8x128xf32>
    %11 = arith.maximumf %9, %10 : vector<8x8x128xf32>
    %12 = arith.truncf %11 : vector<8x8x128xf32> to vector<8x8x128xbf16>
    "tpu.trace_start"() <{level = 10 : i32, message = "gij,gjh->gih"}> : () -> ()
    %cst_11 = arith.constant dense<0.000000e+00> : vector<8x8x128xf32>
    %13 = tpu.matmul %0, %12, %cst_11 {dimension_numbers = #tpu.dot_dimension_numbers<[2], [1], [1], [2], [0, 0, 0, 1, 1, 2], [0], [0]>} : vector<8x8x8xbf16>, vector<8x8x128xbf16>, vector<8x8x128xf32> -> vector<8x8x128xf32>
    "tpu.trace_stop"() : () -> ()
    %14 = arith.truncf %13 : vector<8x8x128xf32> to vector<8x8x128xbf16>
    %c0_12 = arith.constant 0 : index
    %c0_13 = arith.constant 0 : index
    %15 = vector.load %arg5[%c0_12, %c0_13] : memref<128x128xbf16, #tpu.memory_space<vmem>>, vector<128x128xbf16>
    "tpu.trace_start"() <{level = 10 : i32, message = "gnh,hd->gnd"}> : () -> ()
    %cst_14 = arith.constant dense<0.000000e+00> : vector<8x8x128xf32>
    %16 = tpu.matmul %14, %15, %cst_14 {dimension_numbers = #tpu.dot_dimension_numbers<[2], [0], [0, 1], [1], [0, 0, 0, 1, 1, 1], [], []>} : vector<8x8x128xbf16>, vector<128x128xbf16>, vector<8x8x128xf32> -> vector<8x8x128xf32>
    "tpu.trace_stop"() : () -> ()
    %c0_15 = arith.constant 0 : index
    %c0_16 = arith.constant 0 : index
    %17 = vector.load %arg6[%c0_15, %c0_16] : memref<1x128xf32, #tpu.memory_space<vmem>>, vector<1x128xf32>
    %18 = vector.shape_cast %17 : vector<1x128xf32> to vector<1x1x128xf32>
    %19 = vector.broadcast %18 : vector<1x1x128xf32> to vector<8x8x128xf32>
    %20 = arith.addf %16, %19 : vector<8x8x128xf32>
    %cst_17 = arith.constant dense<0.000000e+00> : vector<8x128xf32>
    %21 = vector.multi_reduction <add>, %20, %cst_17 [1] : vector<8x8x128xf32> to vector<8x128xf32>
    %c0_18 = arith.constant 0 : index
    %c0_19 = arith.constant 0 : index
    %22 = vector.load %arg7[%c0_18, %c0_19] : memref<8x128xf32, #tpu.memory_space<vmem>>, vector<8x128xf32>
    tpu.vector_store %arg7[%c0_18, %c0_19], %21 {strides = array<i32>} : memref<8x128xf32, #tpu.memory_space<vmem>>, vector<8x128xf32>,
    return
  }
  func.func @transform_0(%arg0: i32) -> (i32, i32, i32) {
    %c0_i32 = arith.constant 0 : i32
    %c0_i32_0 = arith.constant 0 : i32
    %c0_i32_1 = arith.constant 0 : i32
    return %arg0, %c0_i32, %c0_i32_0 : i32, i32, i32
  }
  func.func @transform_1(%arg0: i32) -> (i32, i32, i32) {
    %c0_i32 = arith.constant 0 : i32
    %c0_i32_0 = arith.constant 0 : i32
    %c0_i32_1 = arith.constant 0 : i32
    return %arg0, %c0_i32, %c0_i32_0 : i32, i32, i32
  }
  func.func @transform_2(%arg0: i32) -> (i32, i32) {
    %c0_i32 = arith.constant 0 : i32
    %c0_i32_0 = arith.constant 0 : i32
    %c0_i32_1 = arith.constant 0 : i32
    return %c0_i32, %c0_i32_0 : i32, i32
  }
  func.func @transform_3(%arg0: i32) -> (i32, i32) {
    %c0_i32 = arith.constant 0 : i32
    %c0_i32_0 = arith.constant 0 : i32
    %c0_i32_1 = arith.constant 0 : i32
    return %c0_i32, %c0_i32_0 : i32, i32
  }
  func.func @transform_4(%arg0: i32) -> (i32, i32) {
    %c0_i32 = arith.constant 0 : i32
    %c0_i32_0 = arith.constant 0 : i32
    %c0_i32_1 = arith.constant 0 : i32
    return %c0_i32, %c0_i32_0 : i32, i32
  }
  func.func @transform_5(%arg0: i32) -> (i32, i32) {
    %c0_i32 = arith.constant 0 : i32
    %c0_i32_0 = arith.constant 0 : i32
    %c0_i32_1 = arith.constant 0 : i32
    return %c0_i32, %c0_i32_0 : i32, i32
  }
  func.func @transform_6(%arg0: i32) -> (i32, i32) {
    %c0_i32 = arith.constant 0 : i32
    %c0_i32_0 = arith.constant 0 : i32
    return %arg0, %c0_i32 : i32, i32
  }
}

</mosaic_0001>

<llo_original>
// kernel: tpu_custom_call.1
$region0: #{tpu_custom_call.1}
  #allocation0 [shape = 'u32[]', space=smem, size = 0x4, offset = 0x4, fixed_abs, tag = 'smem constant byte address 0x4 - core index']
  #allocation1 [shape = 'u32[144,128]{1,0:T(1,128)}', space=vmem, size = 0x12000, scoped, tag = 'internal scratch']
  %s0 = inlined_call_operand.vmem [shape: bf16[16,8,8], index: 0, kind: input, shape index: {}]
  %s1 = inlined_call_operand.vmem [shape: bf16[16,8,32], index: 1, kind: input, shape index: {}]
  %s2 = inlined_call_operand.vmem [shape: bf16[32,128], index: 2, kind: input, shape index: {}]
  %s3 = inlined_call_operand.vmem [shape: f32[1,128], index: 3, kind: input, shape index: {}]
  %s4 = inlined_call_operand.hbm [shape: bf16[128,128], index: 4, kind: input, shape index: {}]
  %s5 = inlined_call_operand.vmem [shape: f32[1,128], index: 5, kind: input, shape index: {}]
  %s6 = inlined_call_operand.hbm [shape: f32[16,128], index: 6, kind: output, shape index: {}]
  %s7 = sld [smem:[#allocation0]]
  $region61: #{tpu_custom_call.1} parent=0
    _
  %s9 = ssub.s32 1, %s7
  %s10 = scalar_select 0, %s9, %s7
  $region1: #{tpu_custom_call.1} parent=0
    #allocation2 [shape = 'u8[32768]{0}', space=vmem, size = 0x8000, scoped, tag = 'input window, operand 4, single buffered']
    #allocation3 [shape = 's32[2]{0}', space=sflag, size = 0x8, scoped, tag = 'scoped memory for tpu_custom_call.1']
    #allocation4 [shape = 's32[2]{0}', space=sflag, size = 0x8, scoped, tag = 'scoped memory for tpu_custom_call.1']
    #allocation5 [shape = 'u8[8192]{0}', space=vmem, size = 0x2000, scoped, tag = 'output window, operand 0']
    %11 = vsyncpa [#allocation3], 0
    %12 = vsyncpa [#allocation4], 0
    %s13 = scalar_lea.sflag [#allocation4], 1
    %14 = vsyncpa %s13, 0
    loop: start=0, step=1, limit=4
    $region2: #{tpu_custom_call.1} parent=1 // loop_pre_header
      _
    $region3: #{tpu_custom_call.1} parent=1 // loop_header
      %s16 = sphi 0, %s20
      %p17 = scmp.ge.s32.totalorder %s16, 4
      %s26 = sphi 0, %s28
      %s29 = sphi 0, %s26
      %s30 = sphi 0, %s29
      %s46 = sphi 0, %s30
      %s52 = sphi 0, %s54
      %s55 = sphi 0, %s52
      %s56 = sphi 0, %s55
      %s72 = sphi 0, %s56
      %s76 = sphi 0, %s76
      %s78 = sphi 0, %s76
      %s79 = sphi 0, %s78
      %s93 = sphi 0, %s79
      %s97 = sphi 0, %s97
      %s99 = sphi 0, %s97
      %s100 = sphi 0, %s99
      %s114 = sphi 0, %s100
      %s118 = sphi 0, %s118
      %s120 = sphi 0, %s118
      %s121 = sphi 0, %s120
      %s135 = sphi 0, %s121
      %s139 = sphi 0, %s139
      %s141 = sphi 0, %s139
      %s142 = sphi 0, %s141
      %s156 = sphi 0, %s142
      %s162 = sphi 0, %s164
      %s165 = sphi 0, %s162
      %s166 = sphi 0, %s165
      %s182 = sphi 0, %s166
    $region4: #{tpu_custom_call.1} parent=1 // loop_header_branch
      %19 = sbr.rel (%p17) target = $region8
    $region5: #{tpu_custom_call.1} parent=1 // loop_body
      %s21 = ssub.s32 %s16, 1
      %s22 = ssub.s32 %s16, 2
      %s23 = sadd.s32 %s16, 1
      %s24 = ssub.s32 %s16, %s23
      %p25 = scmp.eq.s32.totalorder %s24, 0
      %s27 = sadd.s32 %s26, 1
      %s28 = scalar_select %p25, %s26, %s27
      %p31 = pneg %p25
      %p32 = scmp.eq.s32.totalorder %s16, 1
      %p33 = por %p31, %p32
      %p34 = scmp.ne.s32.totalorder %s26, %s29
      %p35 = scmp.eq.s32.totalorder %s16, 0
      %p36 = por %p34, %p35
      %p37 = scmp.ne.s32.totalorder %s26, %s29
      %p38 = scmp.eq.s32.totalorder %s21, 1
      %p39 = por %p37, %p38
      %p40 = scmp.ne.s32.totalorder %s29, %s30
      %p41 = scmp.eq.s32.totalorder %s21, 0
      %p42 = por %p40, %p41
      %p43 = scmp.ne.s32.totalorder %s29, %s30
      %p44 = scmp.eq.s32.totalorder %s22, 1
      %p45 = por %p43, %p44
      %p47 = scmp.ne.s32.totalorder %s30, %s46
      %p48 = scmp.eq.s32.totalorder %s22, 0
      %p49 = por %p47, %p48
      %s50 = ssub.s32 %s16, %s23
      %p51 = scmp.eq.s32.totalorder %s50, 0
      %s53 = sadd.s32 %s52, 1
      %s54 = scalar_select %p51, %s52, %s53
      %p57 = pneg %p51
      %p58 = scmp.eq.s32.totalorder %s16, 1
      %p59 = por %p57, %p58
      %p60 = scmp.ne.s32.totalorder %s52, %s55
      %p61 = scmp.eq.s32.totalorder %s16, 0
      %p62 = por %p60, %p61
      %p63 = scmp.ne.s32.totalorder %s52, %s55
      %p64 = scmp.eq.s32.totalorder %s21, 1
      %p65 = por %p63, %p64
      %p66 = scmp.ne.s32.totalorder %s55, %s56
      %p67 = scmp.eq.s32.totalorder %s21, 0
      %p68 = por %p66, %p67
      %p69 = scmp.ne.s32.totalorder %s55, %s56
      %p70 = scmp.eq.s32.totalorder %s22, 1
      %p71 = por %p69, %p70
      %p73 = scmp.ne.s32.totalorder %s56, %s72
      %p74 = scmp.eq.s32.totalorder %s22, 0
      %p75 = por %p73, %p74
      %s77 = sadd.s32 %s76, 1
      %p80 = scmp.eq.s32.totalorder %s16, 1
      %p81 = scmp.ne.s32.totalorder %s76, %s78
      %p82 = scmp.eq.s32.totalorder %s16, 0
      %p83 = por %p81, %p82
      %p84 = scmp.ne.s32.totalorder %s76, %s78
      %p85 = scmp.eq.s32.totalorder %s21, 1
      %p86 = por %p84, %p85
      %p87 = scmp.ne.s32.totalorder %s78, %s79
      %p88 = scmp.eq.s32.totalorder %s21, 0
      %p89 = por %p87, %p88
      %p90 = scmp.ne.s32.totalorder %s78, %s79
      %p91 = scmp.eq.s32.totalorder %s22, 1
      %p92 = por %p90, %p91
      %p94 = scmp.ne.s32.totalorder %s79, %s93
      %p95 = scmp.eq.s32.totalorder %s22, 0
      %p96 = por %p94, %p95
      %s98 = sadd.s32 %s97, 1
      %p101 = scmp.eq.s32.totalorder %s16, 1
      %p102 = scmp.ne.s32.totalorder %s97, %s99
      %p103 = scmp.eq.s32.totalorder %s16, 0
      %p104 = por %p102, %p103
      %p105 = scmp.ne.s32.totalorder %s97, %s99
      %p106 = scmp.eq.s32.totalorder %s21, 1
      %p107 = por %p105, %p106
      %p108 = scmp.ne.s32.totalorder %s99, %s100
      %p109 = scmp.eq.s32.totalorder %s21, 0
      %p110 = por %p108, %p109
      %p111 = scmp.ne.s32.totalorder %s99, %s100
      %p112 = scmp.eq.s32.totalorder %s22, 1
      %p113 = por %p111, %p112
      %p115 = scmp.ne.s32.totalorder %s100, %s114
      %p116 = scmp.eq.s32.totalorder %s22, 0
      %p117 = por %p115, %p116
      %s119 = sadd.s32 %s118, 1
      %p122 = scmp.eq.s32.totalorder %s16, 1
      %p123 = scmp.ne.s32.totalorder %s118, %s120
      %p124 = scmp.eq.s32.totalorder %s16, 0
      %p125 = por %p123, %p124
      %p126 = scmp.ne.s32.totalorder %s118, %s120
      %p127 = scmp.eq.s32.totalorder %s21, 1
      %p128 = por %p126, %p127
      %p129 = scmp.ne.s32.totalorder %s120, %s121
      %p130 = scmp.eq.s32.totalorder %s21, 0
      %p131 = por %p129, %p130
      %p132 = scmp.ne.s32.totalorder %s120, %s121
      %p133 = scmp.eq.s32.totalorder %s22, 1
      %p134 = por %p132, %p133
      %p136 = scmp.ne.s32.totalorder %s121, %s135
      %p137 = scmp.eq.s32.totalorder %s22, 0
      %p138 = por %p136, %p137
      %s140 = sadd.s32 %s139, 1
      %p143 = scmp.eq.s32.totalorder %s16, 1
      %p144 = scmp.ne.s32.totalorder %s139, %s141
      %p145 = scmp.eq.s32.totalorder %s16, 0
      %p146 = por %p144, %p145
      %p147 = scmp.ne.s32.totalorder %s139, %s141
      %p148 = scmp.eq.s32.totalorder %s21, 1
      %p149 = por %p147, %p148
      %p150 = scmp.ne.s32.totalorder %s141, %s142
      %p151 = scmp.eq.s32.totalorder %s21, 0
      %p152 = por %p150, %p151
      %p153 = scmp.ne.s32.totalorder %s141, %s142
      %p154 = scmp.eq.s32.totalorder %s22, 1
      %p155 = por %p153, %p154
      %p157 = scmp.ne.s32.totalorder %s142, %s156
      %p158 = scmp.eq.s32.totalorder %s22, 0
      %p159 = por %p157, %p158
      %s160 = ssub.s32 %s16, %s23
      %p161 = scmp.eq.s32.totalorder %s160, 0
      %s163 = sadd.s32 %s162, 1
      %s164 = scalar_select %p161, %s162, %s163
      %p167 = pneg %p161
      %p168 = scmp.eq.s32.totalorder %s16, 1
      %p169 = por %p167, %p168
      %p170 = scmp.ne.s32.totalorder %s162, %s165
      %p171 = scmp.eq.s32.totalorder %s16, 0
      %p172 = por %p170, %p171
      %p173 = scmp.ne.s32.totalorder %s162, %s165
      %p174 = scmp.eq.s32.totalorder %s21, 1
      %p175 = por %p173, %p174
      %p176 = scmp.ne.s32.totalorder %s165, %s166
      %p177 = scmp.eq.s32.totalorder %s21, 0
      %p178 = por %p176, %p177
      %p179 = scmp.ne.s32.totalorder %s165, %s166
      %p180 = scmp.eq.s32.totalorder %s22, 1
      %p181 = por %p179, %p180
      %p183 = scmp.ne.s32.totalorder %s166, %s182
      %p184 = scmp.eq.s32.totalorder %s22, 0
      %p185 = por %p183, %p184
      %p186 = scmp.le.s32.totalorder 1, %s16
      %p187 = scmp.lt.s32.totalorder %s16, 3
      %p188 = pnand %p186, %p187
      %p189 = pneg %p188
      // Predicated region
      $region9: #{tpu_custom_call.1} parent=5 // pred_check
        _
      $region10: #{tpu_custom_call.1} parent=5 // pred_check_branch
        %191 = sbr.rel (%p188) target = $region12
      $region11: #{tpu_custom_call.1} parent=5 // pred_region
        %s192 = ssub.s32 %s16, 1
        // Predicated region
        $region13: #{tpu_custom_call.1} parent=11 // pred_check
          %p193 = pneg %p89
        $region14: #{tpu_custom_call.1} parent=11 // pred_check_branch
          %195 = sbr.rel (%p193) target = $region16
        $region15: #{tpu_custom_call.1} parent=11 // pred_region
          _
        $region16: #{tpu_custom_call.1} parent=11 // pred_fallthru
          _
        // Predicated region
        $region17: #{tpu_custom_call.1} parent=11 // pred_check
          %p196 = pneg %p110
        $region18: #{tpu_custom_call.1} parent=11 // pred_check_branch
          %198 = sbr.rel (%p196) target = $region20
        $region19: #{tpu_custom_call.1} parent=11 // pred_region
          _
        $region20: #{tpu_custom_call.1} parent=11 // pred_fallthru
          _
        // Predicated region
        $region21: #{tpu_custom_call.1} parent=11 // pred_check
          %p199 = pneg %p131
        $region22: #{tpu_custom_call.1} parent=11 // pred_check_branch
          %201 = sbr.rel (%p199) target = $region24
        $region23: #{tpu_custom_call.1} parent=11 // pred_region
          %s203 = ssub.s32 1024, 1024
          %204 = vsyncadd [#allocation3], %s203
          %s205 = sshll.u32 [#allocation2], 4
          %s206 = int_to_ptr.vmem [resolvable:$true] %s205
          %211 = dma.hbm_to_vmem [thread:$0]  %s4, 1024, %s206, [#allocation3], 64, 64, 4
        $region24: #{tpu_custom_call.1} parent=11 // pred_fallthru
          _
        // Predicated region
        $region25: #{tpu_custom_call.1} parent=11 // pred_check
          %p212 = pneg %p152
        $region26: #{tpu_custom_call.1} parent=11 // pred_check_branch
          %214 = sbr.rel (%p212) target = $region28
        $region27: #{tpu_custom_call.1} parent=11 // pred_region
          _
        $region28: #{tpu_custom_call.1} parent=11 // pred_fallthru
          _
      $region12: #{tpu_custom_call.1} parent=5 // pred_fallthru
        _
      %p215 = scmp.lt.s32.totalorder %s16, 2
      // Predicated region
      $region29: #{tpu_custom_call.1} parent=5 // pred_check
        %p216 = pneg %p215
      $region30: #{tpu_custom_call.1} parent=5 // pred_check_branch
        %218 = sbr.rel (%p216) target = $region32
      $region31: #{tpu_custom_call.1} parent=5 // pred_region
        // Predicated region
        $region33: #{tpu_custom_call.1} parent=31 // pred_check
          %p219 = pneg %p36
        $region34: #{tpu_custom_call.1} parent=31 // pred_check_branch
          %221 = sbr.rel (%p219) target = $region36
        $region35: #{tpu_custom_call.1} parent=31 // pred_region
          %s222 = smul.u32 8, %s16
          %p223 = scmp.lt.s32.totalorder %s222, 15
          %s224 = scalar_select %p223, %s222, 15
          %s225 = smul.addr %s224, 4
          %s226 = scalar_lea.vmem %s0, %s225
          %s227 = smul.u32 8, %s16
        $region36: #{tpu_custom_call.1} parent=31 // pred_fallthru
          _
        // Predicated region
        $region37: #{tpu_custom_call.1} parent=31 // pred_check
          %p228 = pneg %p62
        $region38: #{tpu_custom_call.1} parent=31 // pred_check_branch
          %230 = sbr.rel (%p228) target = $region40
        $region39: #{tpu_custom_call.1} parent=31 // pred_region
          %s231 = smul.u32 8, %s16
          %p232 = scmp.lt.s32.totalorder %s231, 15
          %s233 = scalar_select %p232, %s231, 15
          %s234 = smul.addr %s233, 4
          %s235 = scalar_lea.vmem %s1, %s234
          %s236 = smul.u32 8, %s16
        $region40: #{tpu_custom_call.1} parent=31 // pred_fallthru
          _
      $region32: #{tpu_custom_call.1} parent=5 // pred_fallthru
        _
      %p237 = scmp.le.s32.totalorder 1, %s16
      %p238 = scmp.lt.s32.totalorder %s16, 3
      %p239 = pnand %p237, %p238
      %p240 = pneg %p239
      // Predicated region
      $region41: #{tpu_custom_call.1} parent=5 // pred_check
        _
      $region42: #{tpu_custom_call.1} parent=5 // pred_check_branch
        %242 = sbr.rel (%p239) target = $region44
      $region43: #{tpu_custom_call.1} parent=5 // pred_region
        %s243 = ssub.s32 %s16, 1
        // Predicated region
        $region45: #{tpu_custom_call.1} parent=43 // pred_check
          %p244 = pneg %p131
        $region46: #{tpu_custom_call.1} parent=43 // pred_check_branch
          %246 = sbr.rel (%p244) target = $region48
        $region47: #{tpu_custom_call.1} parent=43 // pred_region
          %247 = dma.done [#allocation3], 1024
        $region48: #{tpu_custom_call.1} parent=43 // pred_fallthru
          _
        %s248 = smul.u32 8, %s21
        %p249 = scmp.lt.s32.totalorder %s248, 15
        %s250 = scalar_select %p249, %s248, 15
        %s251 = smul.addr %s250, 4
        %s252 = scalar_lea.vmem %s0, %s251
        %p253 = pneg %p42
        %p254 = pneg %p39
        %s255 = smul.u32 8, %s21
        %p256 = scmp.lt.s32.totalorder %s255, 15
        %s257 = scalar_select %p256, %s255, 15
        %s258 = smul.addr %s257, 4
        %s259 = scalar_lea.vmem %s1, %s258
        %p260 = pneg %p68
        %p261 = pneg %p65
        %p262 = pneg %p89
        %p263 = pneg %p86
        %p264 = pneg %p110
        %p265 = pneg %p107
        %p266 = pneg %p131
        %p267 = pneg %p128
        %p268 = pneg %p152
        %p269 = pneg %p149
        %p270 = pneg %p178
        %p271 = pneg %p175
        %s272 = sand.u32 %s165, 1
        %s273 = scalar_lea.sflag [#allocation4], %s272
        %s274 = sand.u32 %s165, 1
        %s275 = smul.addr %s274, 8
        %s276 = scalar_lea.vmem [#allocation5], %s275
        %s277 = smul.u32 8, %s21
        %p278 = scmp.lt.s32.totalorder %s277, 15
        %s279 = scalar_select %p278, %s277, 15
        %s280 = smul.addr %s279, 4
        %s281 = scalar_lea.vmem %s0, %s280
        %s282 = smul.u32 8, %s21
        %s283 = smul.u32 8, %s21
        %p284 = scmp.lt.s32.totalorder %s283, 15
        %s285 = scalar_select %p284, %s283, 15
        %s286 = smul.addr %s285, 4
        %s287 = scalar_lea.vmem %s1, %s286
        %s288 = smul.u32 8, %s21
        %v290 = vld [vmem:[%s281] sm:$0xf]
        %v291 = vld [vmem:[%s281 + $0x4] sm:$0xf]
        %v292 = vld [vmem:[%s281 + $0x8] sm:$0xf]
        %v293 = vld [vmem:[%s281 + $0xc] sm:$0xf]
        %v294 = vld [vmem:[%s281 + $0x10] sm:$0xf]
        %v295 = vld [vmem:[%s281 + $0x14] sm:$0xf]
        %v296 = vld [vmem:[%s281 + $0x18] sm:$0xf]
        %v297 = vld [vmem:[%s281 + $0x1c] sm:$0xf]
        %v298 = vld [vmem:[%s287] sm:$0xf]
        %v299 = vld [vmem:[%s287 + $0x4] sm:$0xf]
        %v300 = vld [vmem:[%s287 + $0x8] sm:$0xf]
        %v301 = vld [vmem:[%s287 + $0xc] sm:$0xf]
        %v302 = vld [vmem:[%s287 + $0x10] sm:$0xf]
        %v303 = vld [vmem:[%s287 + $0x14] sm:$0xf]
        %v304 = vld [vmem:[%s287 + $0x18] sm:$0xf]
        %v305 = vld [vmem:[%s287 + $0x1c] sm:$0xf]
        %vm306 = vcmask 64512
        %v308 = vsel %vm306, %v290, 0
        %vm310 = vcmask 1043456
        %v312 = vsel %vm310, %v298, 0
        %314 = vmatprep.subr.bf16.mxu0 0
        %315 = vmatpush1.bf16.msra.mxu0 %v312
        %316 = vmatprep.subr.bf16.mxu0 0
        %317 = vmatpush1.bf16.msra.mxu0 0
        %318 = vmatprep.subr.bf16.mxu0 0
        %319 = vmatpush1.bf16.msra.mxu0 0
        %320 = vmatprep.subr.bf16.mxu0 0
        %321 = vmatpush1.bf16.msra.mxu0 0
        %322 = vmatprep.subr.bf16.mxu0 0
        %323 = vmatpush1.bf16.msra.mxu0 0
        %324 = vmatprep.subr.bf16.mxu0 0
        %325 = vmatpush1.bf16.msra.mxu0 0
        %326 = vmatprep.subr.bf16.mxu0 0
        %327 = vmatpush1.bf16.msra.mxu0 0
        %328 = vmatprep.subr.bf16.mxu0 0
        %329 = vmatpush1.bf16.msra.mxu0 0
        %330 = vmatprep.subr.bf16.mxu0 0
        %331 = vmatpush1.bf16.msra.mxu0 0
        %332 = vmatprep.subr.bf16.mxu0 0
        %333 = vmatpush1.bf16.msra.mxu0 0
        %334 = vmatprep.subr.bf16.mxu0 0
        %335 = vmatpush1.bf16.msra.mxu0 0
        %336 = vmatprep.subr.bf16.mxu0 0
        %337 = vmatpush1.bf16.msra.mxu0 0
        %338 = vmatprep.subr.bf16.mxu0 0
        %339 = vmatpush1.bf16.msra.mxu0 0
        %340 = vmatprep.subr.bf16.mxu0 0
        %341 = vmatpush1.bf16.msra.mxu0 0
        %342 = vmatprep.subr.bf16.mxu0 0
        %343 = vmatpush1.bf16.msra.mxu0 0
        %344 = vmatprep.subr.bf16.mxu0 0
        %345 = vmatpush1.bf16.msra.mxu0 0
        %346 = vmatprep.mubr.bf16.mxu0 0
        %347 = vmatmul.mubr.bf16.gmra.mrb[0].mxu0 %v308
        %v348 = vpop.f32.mrb[0].mxu0
        %v349 = vadd.f32 0.0, %v348
        %v350 = vpop.f32.mrb[0].mxu0
        %v351 = vpop.f32.mrb[0].mxu0
        %v352 = vpop.f32.mrb[0].mxu0
        %353 = vdwg.mxu0
        %v355 = vsel %vm306, %v291, 0
        %v358 = vsel %vm310, %v299, 0
        %360 = vmatprep.subr.bf16.mxu0 0
        %361 = vmatpush1.bf16.msra.mxu0 %v358
        %362 = vmatprep.subr.bf16.mxu0 0
        %363 = vmatpush1.bf16.msra.mxu0 0
        %364 = vmatprep.subr.bf16.mxu0 0
        %365 = vmatpush1.bf16.msra.mxu0 0
        %366 = vmatprep.subr.bf16.mxu0 0
        %367 = vmatpush1.bf16.msra.mxu0 0
        %368 = vmatprep.subr.bf16.mxu0 0
        %369 = vmatpush1.bf16.msra.mxu0 0
        %370 = vmatprep.subr.bf16.mxu0 0
        %371 = vmatpush1.bf16.msra.mxu0 0
        %372 = vmatprep.subr.bf16.mxu0 0
        %373 = vmatpush1.bf16.msra.mxu0 0
        %374 = vmatprep.subr.bf16.mxu0 0
        %375 = vmatpush1.bf16.msra.mxu0 0
        %376 = vmatprep.subr.bf16.mxu0 0
        %377 = vmatpush1.bf16.msra.mxu0 0
        %378 = vmatprep.subr.bf16.mxu0 0
        %379 = vmatpush1.bf16.msra.mxu0 0
        %380 = vmatprep.subr.bf16.mxu0 0
        %381 = vmatpush1.bf16.msra.mxu0 0
        %382 = vmatprep.subr.bf16.mxu0 0
        %383 = vmatpush1.bf16.msra.mxu0 0
        %384 = vmatprep.subr.bf16.mxu0 0
        %385 = vmatpush1.bf16.msra.mxu0 0
        %386 = vmatprep.subr.bf16.mxu0 0
        %387 = vmatpush1.bf16.msra.mxu0 0
        %388 = vmatprep.subr.bf16.mxu0 0
        %389 = vmatpush1.bf16.msra.mxu0 0
        %390 = vmatprep.subr.bf16.mxu0 0
        %391 = vmatpush1.bf16.msra.mxu0 0
        %392 = vmatprep.mubr.bf16.mxu0 0
        %393 = vmatmul.mubr.bf16.gmra.mrb[0].mxu0 %v355
        %v394 = vpop.f32.mrb[0].mxu0
        %v395 = vadd.f32 0.0, %v394
        %v396 = vpop.f32.mrb[0].mxu0
        %v397 = vpop.f32.mrb[0].mxu0
        %v398 = vpop.f32.mrb[0].mxu0
        %399 = vdwg.mxu0
        %v401 = vsel %vm306, %v292, 0
        %v404 = vsel %vm310, %v300, 0
        %406 = vmatprep.subr.bf16.mxu0 0
        %407 = vmatpush1.bf16.msra.mxu0 %v404
        %408 = vmatprep.subr.bf16.mxu0 0
        %409 = vmatpush1.bf16.msra.mxu0 0
        %410 = vmatprep.subr.bf16.mxu0 0
        %411 = vmatpush1.bf16.msra.mxu0 0
        %412 = vmatprep.subr.bf16.mxu0 0
        %413 = vmatpush1.bf16.msra.mxu0 0
        %414 = vmatprep.subr.bf16.mxu0 0
        %415 = vmatpush1.bf16.msra.mxu0 0
        %416 = vmatprep.subr.bf16.mxu0 0
        %417 = vmatpush1.bf16.msra.mxu0 0
        %418 = vmatprep.subr.bf16.mxu0 0
        %419 = vmatpush1.bf16.msra.mxu0 0
        %420 = vmatprep.subr.bf16.mxu0 0
        %421 = vmatpush1.bf16.msra.mxu0 0
        %422 = vmatprep.subr.bf16.mxu0 0
        %423 = vmatpush1.bf16.msra.mxu0 0
        %424 = vmatprep.subr.bf16.mxu0 0
        %425 = vmatpush1.bf16.msra.mxu0 0
        %426 = vmatprep.subr.bf16.mxu0 0
        %427 = vmatpush1.bf16.msra.mxu0 0
        %428 = vmatprep.subr.bf16.mxu0 0
        %429 = vmatpush1.bf16.msra.mxu0 0
        %430 = vmatprep.subr.bf16.mxu0 0
        %431 = vmatpush1.bf16.msra.mxu0 0
        %432 = vmatprep.subr.bf16.mxu0 0
        %433 = vmatpush1.bf16.msra.mxu0 0
        %434 = vmatprep.subr.bf16.mxu0 0
        %435 = vmatpush1.bf16.msra.mxu0 0
        %436 = vmatprep.subr.bf16.mxu0 0
        %437 = vmatpush1.bf16.msra.mxu0 0
        %438 = vmatprep.mubr.bf16.mxu0 0
        %439 = vmatmul.mubr.bf16.gmra.mrb[0].mxu0 %v401
        %v440 = vpop.f32.mrb[0].mxu0
        %v441 = vadd.f32 0.0, %v440
        %v442 = vpop.f32.mrb[0].mxu0
        %v443 = vpop.f32.mrb[0].mxu0
        %v444 = vpop.f32.mrb[0].mxu0
        %445 = vdwg.mxu0
        %v447 = vsel %vm306, %v293, 0
        %v450 = vsel %vm310, %v301, 0
        %452 = vmatprep.subr.bf16.mxu0 0
        %453 = vmatpush1.bf16.msra.mxu0 %v450
        %454 = vmatprep.subr.bf16.mxu0 0
        %455 = vmatpush1.bf16.msra.mxu0 0
        %456 = vmatprep.subr.bf16.mxu0 0
        %457 = vmatpush1.bf16.msra.mxu0 0
        %458 = vmatprep.subr.bf16.mxu0 0
        %459 = vmatpush1.bf16.msra.mxu0 0
        %460 = vmatprep.subr.bf16.mxu0 0
        %461 = vmatpush1.bf16.msra.mxu0 0
        %462 = vmatprep.subr.bf16.mxu0 0
        %463 = vmatpush1.bf16.msra.mxu0 0
        %464 = vmatprep.subr.bf16.mxu0 0
        %465 = vmatpush1.bf16.msra.mxu0 0
        %466 = vmatprep.subr.bf16.mxu0 0
        %467 = vmatpush1.bf16.msra.mxu0 0
        %468 = vmatprep.subr.bf16.mxu0 0
        %469 = vmatpush1.bf16.msra.mxu0 0
        %470 = vmatprep.subr.bf16.mxu0 0
        %471 = vmatpush1.bf16.msra.mxu0 0
        %472 = vmatprep.subr.bf16.mxu0 0
        %473 = vmatpush1.bf16.msra.mxu0 0
        %474 = vmatprep.subr.bf16.mxu0 0
        %475 = vmatpush1.bf16.msra.mxu0 0
        %476 = vmatprep.subr.bf16.mxu0 0
        %477 = vmatpush1.bf16.msra.mxu0 0
        %478 = vmatprep.subr.bf16.mxu0 0
        %479 = vmatpush1.bf16.msra.mxu0 0
        %480 = vmatprep.subr.bf16.mxu0 0
        %481 = vmatpush1.bf16.msra.mxu0 0
        %482 = vmatprep.subr.bf16.mxu0 0
        %483 = vmatpush1.bf16.msra.mxu0 0
        %484 = vmatprep.mubr.bf16.mxu0 0
        %485 = vmatmul.mubr.bf16.gmra.mrb[0].mxu0 %v447
        %v486 = vpop.f32.mrb[0].mxu0
        %v487 = vadd.f32 0.0, %v486
        %v488 = vpop.f32.mrb[0].mxu0
        %v489 = vpop.f32.mrb[0].mxu0
        %v490 = vpop.f32.mrb[0].mxu0
        %491 = vdwg.mxu0
        %v493 = vsel %vm306, %v294, 0
        %v496 = vsel %vm310, %v302, 0
        %498 = vmatprep.subr.bf16.mxu0 0
        %499 = vmatpush1.bf16.msra.mxu0 %v496
        %500 = vmatprep.subr.bf16.mxu0 0
        %501 = vmatpush1.bf16.msra.mxu0 0
        %502 = vmatprep.subr.bf16.mxu0 0
        %503 = vmatpush1.bf16.msra.mxu0 0
        %504 = vmatprep.subr.bf16.mxu0 0
        %505 = vmatpush1.bf16.msra.mxu0 0
        %506 = vmatprep.subr.bf16.mxu0 0
        %507 = vmatpush1.bf16.msra.mxu0 0
        %508 = vmatprep.subr.bf16.mxu0 0
        %509 = vmatpush1.bf16.msra.mxu0 0
        %510 = vmatprep.subr.bf16.mxu0 0
        %511 = vmatpush1.bf16.msra.mxu0 0
        %512 = vmatprep.subr.bf16.mxu0 0
        %513 = vmatpush1.bf16.msra.mxu0 0
        %514 = vmatprep.subr.bf16.mxu0 0
        %515 = vmatpush1.bf16.msra.mxu0 0
        %516 = vmatprep.subr.bf16.mxu0 0
        %517 = vmatpush1.bf16.msra.mxu0 0
        %518 = vmatprep.subr.bf16.mxu0 0
        %519 = vmatpush1.bf16.msra.mxu0 0
        %520 = vmatprep.subr.bf16.mxu0 0
        %521 = vmatpush1.bf16.msra.mxu0 0
        %522 = vmatprep.subr.bf16.mxu0 0
        %523 = vmatpush1.bf16.msra.mxu0 0
        %524 = vmatprep.subr.bf16.mxu0 0
        %525 = vmatpush1.bf16.msra.mxu0 0
        %526 = vmatprep.subr.bf16.mxu0 0
        %527 = vmatpush1.bf16.msra.mxu0 0
        %528 = vmatprep.subr.bf16.mxu0 0
        %529 = vmatpush1.bf16.msra.mxu0 0
        %530 = vmatprep.mubr.bf16.mxu0 0
        %531 = vmatmul.mubr.bf16.gmra.mrb[0].mxu0 %v493
        %v532 = vpop.f32.mrb[0].mxu0
        %v533 = vadd.f32 0.0, %v532
        %v534 = vpop.f32.mrb[0].mxu0
        %v535 = vpop.f32.mrb[0].mxu0
        %v536 = vpop.f32.mrb[0].mxu0
        %537 = vdwg.mxu0
        %v539 = vsel %vm306, %v295, 0
        %v542 = vsel %vm310, %v303, 0
        %544 = vmatprep.subr.bf16.mxu0 0
        %545 = vmatpush1.bf16.msra.mxu0 %v542
        %546 = vmatprep.subr.bf16.mxu0 0
        %547 = vmatpush1.bf16.msra.mxu0 0
        %548 = vmatprep.subr.bf16.mxu0 0
        %549 = vmatpush1.bf16.msra.mxu0 0
        %550 = vmatprep.subr.bf16.mxu0 0
        %551 = vmatpush1.bf16.msra.mxu0 0
        %552 = vmatprep.subr.bf16.mxu0 0
        %553 = vmatpush1.bf16.msra.mxu0 0
        %554 = vmatprep.subr.bf16.mxu0 0
        %555 = vmatpush1.bf16.msra.mxu0 0
        %556 = vmatprep.subr.bf16.mxu0 0
        %557 = vmatpush1.bf16.msra.mxu0 0
        %558 = vmatprep.subr.bf16.mxu0 0
        %559 = vmatpush1.bf16.msra.mxu0 0
        %560 = vmatprep.subr.bf16.mxu0 0
        %561 = vmatpush1.bf16.msra.mxu0 0
        %562 = vmatprep.subr.bf16.mxu0 0
        %563 = vmatpush1.bf16.msra.mxu0 0
        %564 = vmatprep.subr.bf16.mxu0 0
        %565 = vmatpush1.bf16.msra.mxu0 0
        %566 = vmatprep.subr.bf16.mxu0 0
        %567 = vmatpush1.bf16.msra.mxu0 0
        %568 = vmatprep.subr.bf16.mxu0 0
        %569 = vmatpush1.bf16.msra.mxu0 0
        %570 = vmatprep.subr.bf16.mxu0 0
        %571 = vmatpush1.bf16.msra.mxu0 0
        %572 = vmatprep.subr.bf16.mxu0 0
        %573 = vmatpush1.bf16.msra.mxu0 0
        %574 = vmatprep.subr.bf16.mxu0 0
        %575 = vmatpush1.bf16.msra.mxu0 0
        %576 = vmatprep.mubr.bf16.mxu0 0
        %577 = vmatmul.mubr.bf16.gmra.mrb[0].mxu0 %v539
        %v578 = vpop.f32.mrb[0].mxu0
        %v579 = vadd.f32 0.0, %v578
        %v580 = vpop.f32.mrb[0].mxu0
        %v581 = vpop.f32.mrb[0].mxu0
        %v582 = vpop.f32.mrb[0].mxu0
        %583 = vdwg.mxu0
        %v585 = vsel %vm306, %v296, 0
        %v588 = vsel %vm310, %v304, 0
        %590 = vmatprep.subr.bf16.mxu0 0
        %591 = vmatpush1.bf16.msra.mxu0 %v588
        %592 = vmatprep.subr.bf16.mxu0 0
        %593 = vmatpush1.bf16.msra.mxu0 0
        %594 = vmatprep.subr.bf16.mxu0 0
        %595 = vmatpush1.bf16.msra.mxu0 0
        %596 = vmatprep.subr.bf16.mxu0 0
        %597 = vmatpush1.bf16.msra.mxu0 0
        %598 = vmatprep.subr.bf16.mxu0 0
        %599 = vmatpush1.bf16.msra.mxu0 0
        %600 = vmatprep.subr.bf16.mxu0 0
        %601 = vmatpush1.bf16.msra.mxu0 0
        %602 = vmatprep.subr.bf16.mxu0 0
        %603 = vmatpush1.bf16.msra.mxu0 0
        %604 = vmatprep.subr.bf16.mxu0 0
        %605 = vmatpush1.bf16.msra.mxu0 0
        %606 = vmatprep.subr.bf16.mxu0 0
        %607 = vmatpush1.bf16.msra.mxu0 0
        %608 = vmatprep.subr.bf16.mxu0 0
        %609 = vmatpush1.bf16.msra.mxu0 0
        %610 = vmatprep.subr.bf16.mxu0 0
        %611 = vmatpush1.bf16.msra.mxu0 0
        %612 = vmatprep.subr.bf16.mxu0 0
        %613 = vmatpush1.bf16.msra.mxu0 0
        %614 = vmatprep.subr.bf16.mxu0 0
        %615 = vmatpush1.bf16.msra.mxu0 0
        %616 = vmatprep.subr.bf16.mxu0 0
        %617 = vmatpush1.bf16.msra.mxu0 0
        %618 = vmatprep.subr.bf16.mxu0 0
        %619 = vmatpush1.bf16.msra.mxu0 0
        %620 = vmatprep.subr.bf16.mxu0 0
        %621 = vmatpush1.bf16.msra.mxu0 0
        %622 = vmatprep.mubr.bf16.mxu0 0
        %623 = vmatmul.mubr.bf16.gmra.mrb[0].mxu0 %v585
        %v624 = vpop.f32.mrb[0].mxu0
        %v625 = vadd.f32 0.0, %v624
        %v626 = vpop.f32.mrb[0].mxu0
        %v627 = vpop.f32.mrb[0].mxu0
        %v628 = vpop.f32.mrb[0].mxu0
        %629 = vdwg.mxu0
        %v631 = vsel %vm306, %v297, 0
        %v634 = vsel %vm310, %v305, 0
        %636 = vmatprep.subr.bf16.mxu0 0
        %637 = vmatpush1.bf16.msra.mxu0 %v634
        %638 = vmatprep.subr.bf16.mxu0 0
        %639 = vmatpush1.bf16.msra.mxu0 0
        %640 = vmatprep.subr.bf16.mxu0 0
        %641 = vmatpush1.bf16.msra.mxu0 0
        %642 = vmatprep.subr.bf16.mxu0 0
        %643 = vmatpush1.bf16.msra.mxu0 0
        %644 = vmatprep.subr.bf16.mxu0 0
        %645 = vmatpush1.bf16.msra.mxu0 0
        %646 = vmatprep.subr.bf16.mxu0 0
        %647 = vmatpush1.bf16.msra.mxu0 0
        %648 = vmatprep.subr.bf16.mxu0 0
        %649 = vmatpush1.bf16.msra.mxu0 0
        %650 = vmatprep.subr.bf16.mxu0 0
        %651 = vmatpush1.bf16.msra.mxu0 0
        %652 = vmatprep.subr.bf16.mxu0 0
        %653 = vmatpush1.bf16.msra.mxu0 0
        %654 = vmatprep.subr.bf16.mxu0 0
        %655 = vmatpush1.bf16.msra.mxu0 0
        %656 = vmatprep.subr.bf16.mxu0 0
        %657 = vmatpush1.bf16.msra.mxu0 0
        %658 = vmatprep.subr.bf16.mxu0 0
        %659 = vmatpush1.bf16.msra.mxu0 0
        %660 = vmatprep.subr.bf16.mxu0 0
        %661 = vmatpush1.bf16.msra.mxu0 0
        %662 = vmatprep.subr.bf16.mxu0 0
        %663 = vmatpush1.bf16.msra.mxu0 0
        %664 = vmatprep.subr.bf16.mxu0 0
        %665 = vmatpush1.bf16.msra.mxu0 0
        %666 = vmatprep.subr.bf16.mxu0 0
        %667 = vmatpush1.bf16.msra.mxu0 0
        %668 = vmatprep.mubr.bf16.mxu0 0
        %669 = vmatmul.mubr.bf16.gmra.mrb[0].mxu0 %v631
        %v670 = vpop.f32.mrb[0].mxu0
        %v671 = vadd.f32 0.0, %v670
        %v672 = vpop.f32.mrb[0].mxu0
        %v673 = vpop.f32.mrb[0].mxu0
        %v674 = vpop.f32.mrb[0].mxu0
        %675 = vdwg.mxu0
        %v676 = vpack.c.bf16 %v349, %v349
        %v677 = vpack.c.bf16 %v395, %v395
        %v678 = vpack.c.bf16 %v441, %v441
        %v679 = vpack.c.bf16 %v487, %v487
        %v680 = vpack.c.bf16 %v533, %v533
        %v681 = vpack.c.bf16 %v579, %v579
        %v682 = vpack.c.bf16 %v625, %v625
        %v683 = vpack.c.bf16 %v671, %v671
        %v684 = vld [vmem:[%s2] sm:$0xf]
        %v685 = vld [vmem:[%s2 + $0x4] sm:$0xf]
        %v686 = vld [vmem:[%s2 + $0x8] sm:$0xf]
        %v687 = vld [vmem:[%s2 + $0xc] sm:$0xf]
        %v688 = vld [vmem:[%s3] sm:$0x1]
        %v690 = vlaneseq
        %v691 = vshrl.u32 %v690, 7
        %v692 = vsub.s32 0, %v691
        %v693 = vrot.slane %v688, %v692
        %v703 = vunpack.c.l.b16 %v676
        %v704 = vunpack.c.l.b16 %v677
        %v705 = vunpack.c.l.b16 %v678
        %v706 = vunpack.c.l.b16 %v679
        %v707 = vunpack.c.l.b16 %v680
        %v708 = vunpack.c.l.b16 %v681
        %v709 = vunpack.c.l.b16 %v682
        %v710 = vunpack.c.l.b16 %v683
        %v711 = vpack.c.b16 %v704, %v703
        %v712 = vpack.c.b16 %v706, %v705
        %v713 = vpack.c.b16 %v708, %v707
        %v714 = vpack.c.b16 %v710, %v709
        %v719 = vunpack.c.l.b16 %v684
        %v720 = vunpack.c.l.b16 %v685
        %v721 = vunpack.c.l.b16 %v686
        %v722 = vunpack.c.l.b16 %v687
        %v723 = vpack.c.b16 %v720, %v719
        %v724 = vpack.c.b16 %v722, %v721
        %vm727 = vcmask 261120
        %v729 = vsel %vm727, %v711, 0
        %v732 = vsel %vm727, %v712, 0
        %v735 = vsel %vm727, %v713, 0
        %v738 = vsel %vm727, %v714, 0
        %740 = vmatprep.subr.bf16.mxu0 0
        %741 = vmatpush1.bf16.msra.mxu0 %v723
        %742 = vmatprep.subr.bf16.mxu0 0
        %743 = vmatpush1.bf16.msra.mxu0 %v724
        %744 = vmatprep.subr.bf16.mxu0 0
        %745 = vmatpush1.bf16.msra.mxu0 0
        %746 = vmatprep.subr.bf16.mxu0 0
        %747 = vmatpush1.bf16.msra.mxu0 0
        %748 = vmatprep.subr.bf16.mxu0 0
        %749 = vmatpush1.bf16.msra.mxu0 0
        %750 = vmatprep.subr.bf16.mxu0 0
        %751 = vmatpush1.bf16.msra.mxu0 0
        %752 = vmatprep.subr.bf16.mxu0 0
        %753 = vmatpush1.bf16.msra.mxu0 0
        %754 = vmatprep.subr.bf16.mxu0 0
        %755 = vmatpush1.bf16.msra.mxu0 0
        %756 = vmatprep.subr.bf16.mxu0 0
        %757 = vmatpush1.bf16.msra.mxu0 0
        %758 = vmatprep.subr.bf16.mxu0 0
        %759 = vmatpush1.bf16.msra.mxu0 0
        %760 = vmatprep.subr.bf16.mxu0 0
        %761 = vmatpush1.bf16.msra.mxu0 0
        %762 = vmatprep.subr.bf16.mxu0 0
        %763 = vmatpush1.bf16.msra.mxu0 0
        %764 = vmatprep.subr.bf16.mxu0 0
        %765 = vmatpush1.bf16.msra.mxu0 0
        %766 = vmatprep.subr.bf16.mxu0 0
        %767 = vmatpush1.bf16.msra.mxu0 0
        %768 = vmatprep.subr.bf16.mxu0 0
        %769 = vmatpush1.bf16.msra.mxu0 0
        %770 = vmatprep.subr.bf16.mxu0 0
        %771 = vmatpush1.bf16.msra.mxu0 0
        %772 = vmatprep.mubr.bf16.mxu0 0
        %773 = vmatmul.mubr.bf16.gmra.mrb[0].mxu0 %v729
        %v774 = vpop.f32.mrb[0].mxu0
        %v775 = vadd.f32 %v693, %v774
        %v776 = vpop.f32.mrb[0].mxu0
        %v777 = vpop.f32.mrb[0].mxu0
        %v778 = vadd.f32 %v693, %v777
        %v779 = vpop.f32.mrb[0].mxu0
        %780 = vmatprep.mubr.bf16.mxu0 0
        %781 = vmatmul.mubr.bf16.gmra.mrb[0].mxu0 %v732
        %v782 = vpop.f32.mrb[0].mxu0
        %v783 = vadd.f32 %v693, %v782
        %v784 = vpop.f32.mrb[0].mxu0
        %v785 = vpop.f32.mrb[0].mxu0
        %v786 = vadd.f32 %v693, %v785
        %v787 = vpop.f32.mrb[0].mxu0
        %788 = vmatprep.mubr.bf16.mxu0 0
        %789 = vmatmul.mubr.bf16.gmra.mrb[0].mxu0 %v735
        %v790 = vpop.f32.mrb[0].mxu0
        %v791 = vadd.f32 %v693, %v790
        %v792 = vpop.f32.mrb[0].mxu0
        %v793 = vpop.f32.mrb[0].mxu0
        %v794 = vadd.f32 %v693, %v793
        %v795 = vpop.f32.mrb[0].mxu0
        %796 = vmatprep.mubr.bf16.mxu0 0
        %797 = vmatmul.mubr.bf16.gmra.mrb[0].mxu0 %v738
        %v798 = vpop.f32.mrb[0].mxu0
        %v799 = vadd.f32 %v693, %v798
        %v800 = vpop.f32.mrb[0].mxu0
        %v801 = vpop.f32.mrb[0].mxu0
        %v802 = vadd.f32 %v693, %v801
        %v803 = vpop.f32.mrb[0].mxu0
        %804 = vdwg.mxu0
        %v805 = vmax.f32 %v775, 0.0
        %v806 = vmax.f32 %v778, 0.0
        %v807 = vmax.f32 %v783, 0.0
        %v808 = vmax.f32 %v786, 0.0
        %v809 = vmax.f32 %v791, 0.0
        %v810 = vmax.f32 %v794, 0.0
        %v811 = vmax.f32 %v799, 0.0
        %v812 = vmax.f32 %v802, 0.0
        %v813 = vpack.c.bf16 %v805, %v805
        %v814 = vpack.c.bf16 %v806, %v806
        %v815 = vpack.c.bf16 %v807, %v807
        %v816 = vpack.c.bf16 %v808, %v808
        %v817 = vpack.c.bf16 %v809, %v809
        %v818 = vpack.c.bf16 %v810, %v810
        %v819 = vpack.c.bf16 %v811, %v811
        %v820 = vpack.c.bf16 %v812, %v812
        %v822 = vsel %vm310, %v813, 0
        %824 = vmatprep.subr.bf16.mxu0 0
        %825 = vmatpush1.bf16.msra.mxu0 %v822
        %826 = vmatprep.subr.bf16.mxu0 0
        %827 = vmatpush1.bf16.msra.mxu0 0
        %828 = vmatprep.subr.bf16.mxu0 0
        %829 = vmatpush1.bf16.msra.mxu0 0
        %830 = vmatprep.subr.bf16.mxu0 0
        %831 = vmatpush1.bf16.msra.mxu0 0
        %832 = vmatprep.subr.bf16.mxu0 0
        %833 = vmatpush1.bf16.msra.mxu0 0
        %834 = vmatprep.subr.bf16.mxu0 0
        %835 = vmatpush1.bf16.msra.mxu0 0
        %836 = vmatprep.subr.bf16.mxu0 0
        %837 = vmatpush1.bf16.msra.mxu0 0
        %838 = vmatprep.subr.bf16.mxu0 0
        %839 = vmatpush1.bf16.msra.mxu0 0
        %840 = vmatprep.subr.bf16.mxu0 0
        %841 = vmatpush1.bf16.msra.mxu0 0
        %842 = vmatprep.subr.bf16.mxu0 0
        %843 = vmatpush1.bf16.msra.mxu0 0
        %844 = vmatprep.subr.bf16.mxu0 0
        %845 = vmatpush1.bf16.msra.mxu0 0
        %846 = vmatprep.subr.bf16.mxu0 0
        %847 = vmatpush1.bf16.msra.mxu0 0
        %848 = vmatprep.subr.bf16.mxu0 0
        %849 = vmatpush1.bf16.msra.mxu0 0
        %850 = vmatprep.subr.bf16.mxu0 0
        %851 = vmatpush1.bf16.msra.mxu0 0
        %852 = vmatprep.subr.bf16.mxu0 0
        %853 = vmatpush1.bf16.msra.mxu0 0
        %854 = vmatprep.subr.bf16.mxu0 0
        %855 = vmatpush1.bf16.msra.mxu0 0
        %856 = vmatprep.mubr.bf16.mxu0 0
        %857 = vmatmul.mubr.bf16.gmra.mrb[0].mxu0 %v308
        %v858 = vpop.f32.mrb[0].mxu0
        %v859 = vadd.f32 0.0, %v858
        %v860 = vpop.f32.mrb[0].mxu0
        %v861 = vpop.f32.mrb[0].mxu0
        %v862 = vpop.f32.mrb[0].mxu0
        %863 = vdwg.mxu0
        %v865 = vsel %vm310, %v814, 0
        %867 = vmatprep.subr.bf16.mxu0 0
        %868 = vmatpush1.bf16.msra.mxu0 %v865
        %869 = vmatprep.subr.bf16.mxu0 0
        %870 = vmatpush1.bf16.msra.mxu0 0
        %871 = vmatprep.subr.bf16.mxu0 0
        %872 = vmatpush1.bf16.msra.mxu0 0
        %873 = vmatprep.subr.bf16.mxu0 0
        %874 = vmatpush1.bf16.msra.mxu0 0
        %875 = vmatprep.subr.bf16.mxu0 0
        %876 = vmatpush1.bf16.msra.mxu0 0
        %877 = vmatprep.subr.bf16.mxu0 0
        %878 = vmatpush1.bf16.msra.mxu0 0
        %879 = vmatprep.subr.bf16.mxu0 0
        %880 = vmatpush1.bf16.msra.mxu0 0
        %881 = vmatprep.subr.bf16.mxu0 0
        %882 = vmatpush1.bf16.msra.mxu0 0
        %883 = vmatprep.subr.bf16.mxu0 0
        %884 = vmatpush1.bf16.msra.mxu0 0
        %885 = vmatprep.subr.bf16.mxu0 0
        %886 = vmatpush1.bf16.msra.mxu0 0
        %887 = vmatprep.subr.bf16.mxu0 0
        %888 = vmatpush1.bf16.msra.mxu0 0
        %889 = vmatprep.subr.bf16.mxu0 0
        %890 = vmatpush1.bf16.msra.mxu0 0
        %891 = vmatprep.subr.bf16.mxu0 0
        %892 = vmatpush1.bf16.msra.mxu0 0
        %893 = vmatprep.subr.bf16.mxu0 0
        %894 = vmatpush1.bf16.msra.mxu0 0
        %895 = vmatprep.subr.bf16.mxu0 0
        %896 = vmatpush1.bf16.msra.mxu0 0
        %897 = vmatprep.subr.bf16.mxu0 0
        %898 = vmatpush1.bf16.msra.mxu0 0
        %899 = vmatprep.mubr.bf16.mxu0 0
        %900 = vmatmul.mubr.bf16.gmra.mrb[0].mxu0 %v355
        %v901 = vpop.f32.mrb[0].mxu0
        %v902 = vadd.f32 0.0, %v901
        %v903 = vpop.f32.mrb[0].mxu0
        %v904 = vpop.f32.mrb[0].mxu0
        %v905 = vpop.f32.mrb[0].mxu0
        %906 = vdwg.mxu0
        %v908 = vsel %vm310, %v815, 0
        %910 = vmatprep.subr.bf16.mxu0 0
        %911 = vmatpush1.bf16.msra.mxu0 %v908
        %912 = vmatprep.subr.bf16.mxu0 0
        %913 = vmatpush1.bf16.msra.mxu0 0
        %914 = vmatprep.subr.bf16.mxu0 0
        %915 = vmatpush1.bf16.msra.mxu0 0
        %916 = vmatprep.subr.bf16.mxu0 0
        %917 = vmatpush1.bf16.msra.mxu0 0
        %918 = vmatprep.subr.bf16.mxu0 0
        %919 = vmatpush1.bf16.msra.mxu0 0
        %920 = vmatprep.subr.bf16.mxu0 0
        %921 = vmatpush1.bf16.msra.mxu0 0
        %922 = vmatprep.subr.bf16.mxu0 0
        %923 = vmatpush1.bf16.msra.mxu0 0
        %924 = vmatprep.subr.bf16.mxu0 0
        %925 = vmatpush1.bf16.msra.mxu0 0
        %926 = vmatprep.subr.bf16.mxu0 0
        %927 = vmatpush1.bf16.msra.mxu0 0
        %928 = vmatprep.subr.bf16.mxu0 0
        %929 = vmatpush1.bf16.msra.mxu0 0
        %930 = vmatprep.subr.bf16.mxu0 0
        %931 = vmatpush1.bf16.msra.mxu0 0
        %932 = vmatprep.subr.bf16.mxu0 0
        %933 = vmatpush1.bf16.msra.mxu0 0
        %934 = vmatprep.subr.bf16.mxu0 0
        %935 = vmatpush1.bf16.msra.mxu0 0
        %936 = vmatprep.subr.bf16.mxu0 0
        %937 = vmatpush1.bf16.msra.mxu0 0
        %938 = vmatprep.subr.bf16.mxu0 0
        %939 = vmatpush1.bf16.msra.mxu0 0
        %940 = vmatprep.subr.bf16.mxu0 0
        %941 = vmatpush1.bf16.msra.mxu0 0
        %942 = vmatprep.mubr.bf16.mxu0 0
        %943 = vmatmul.mubr.bf16.gmra.mrb[0].mxu0 %v401
        %v944 = vpop.f32.mrb[0].mxu0
        %v945 = vadd.f32 0.0, %v944
        %v946 = vpop.f32.mrb[0].mxu0
        %v947 = vpop.f32.mrb[0].mxu0
        %v948 = vpop.f32.mrb[0].mxu0
        %949 = vdwg.mxu0
        %v951 = vsel %vm310, %v816, 0
        %953 = vmatprep.subr.bf16.mxu0 0
        %954 = vmatpush1.bf16.msra.mxu0 %v951
        %955 = vmatprep.subr.bf16.mxu0 0
        %956 = vmatpush1.bf16.msra.mxu0 0
        %957 = vmatprep.subr.bf16.mxu0 0
        %958 = vmatpush1.bf16.msra.mxu0 0
        %959 = vmatprep.subr.bf16.mxu0 0
        %960 = vmatpush1.bf16.msra.mxu0 0
        %961 = vmatprep.subr.bf16.mxu0 0
        %962 = vmatpush1.bf16.msra.mxu0 0
        %963 = vmatprep.subr.bf16.mxu0 0
        %964 = vmatpush1.bf16.msra.mxu0 0
        %965 = vmatprep.subr.bf16.mxu0 0
        %966 = vmatpush1.bf16.msra.mxu0 0
        %967 = vmatprep.subr.bf16.mxu0 0
        %968 = vmatpush1.bf16.msra.mxu0 0
        %969 = vmatprep.subr.bf16.mxu0 0
        %970 = vmatpush1.bf16.msra.mxu0 0
        %971 = vmatprep.subr.bf16.mxu0 0
        %972 = vmatpush1.bf16.msra.mxu0 0
        %973 = vmatprep.subr.bf16.mxu0 0
        %974 = vmatpush1.bf16.msra.mxu0 0
        %975 = vmatprep.subr.bf16.mxu0 0
        %976 = vmatpush1.bf16.msra.mxu0 0
        %977 = vmatprep.subr.bf16.mxu0 0
        %978 = vmatpush1.bf16.msra.mxu0 0
        %979 = vmatprep.subr.bf16.mxu0 0
        %980 = vmatpush1.bf16.msra.mxu0 0
        %981 = vmatprep.subr.bf16.mxu0 0
        %982 = vmatpush1.bf16.msra.mxu0 0
        %983 = vmatprep.subr.bf16.mxu0 0
        %984 = vmatpush1.bf16.msra.mxu0 0
        %985 = vmatprep.mubr.bf16.mxu0 0
        %986 = vmatmul.mubr.bf16.gmra.mrb[0].mxu0 %v447
        %v987 = vpop.f32.mrb[0].mxu0
        %v988 = vadd.f32 0.0, %v987
        %v989 = vpop.f32.mrb[0].mxu0
        %v990 = vpop.f32.mrb[0].mxu0
        %v991 = vpop.f32.mrb[0].mxu0
        %992 = vdwg.mxu0
        %v994 = vsel %vm310, %v817, 0
        %996 = vmatprep.subr.bf16.mxu0 0
        %997 = vmatpush1.bf16.msra.mxu0 %v994
        %998 = vmatprep.subr.bf16.mxu0 0
        %999 = vmatpush1.bf16.msra.mxu0 0
        %1000 = vmatprep.subr.bf16.mxu0 0
        %1001 = vmatpush1.bf16.msra.mxu0 0
        %1002 = vmatprep.subr.bf16.mxu0 0
        %1003 = vmatpush1.bf16.msra.mxu0 0
        %1004 = vmatprep.subr.bf16.mxu0 0
        %1005 = vmatpush1.bf16.msra.mxu0 0
        %1006 = vmatprep.subr.bf16.mxu0 0
        %1007 = vmatpush1.bf16.msra.mxu0 0
        %1008 = vmatprep.subr.bf16.mxu0 0
        %1009 = vmatpush1.bf16.msra.mxu0 0
        %1010 = vmatprep.subr.bf16.mxu0 0
        %1011 = vmatpush1.bf16.msra.mxu0 0
        %1012 = vmatprep.subr.bf16.mxu0 0
        %1013 = vmatpush1.bf16.msra.mxu0 0
        %1014 = vmatprep.subr.bf16.mxu0 0
        %1015 = vmatpush1.bf16.msra.mxu0 0
        %1016 = vmatprep.subr.bf16.mxu0 0
        %1017 = vmatpush1.bf16.msra.mxu0 0
        %1018 = vmatprep.subr.bf16.mxu0 0
        %1019 = vmatpush1.bf16.msra.mxu0 0
        %1020 = vmatprep.subr.bf16.mxu0 0
        %1021 = vmatpush1.bf16.msra.mxu0 0
        %1022 = vmatprep.subr.bf16.mxu0 0
        %1023 = vmatpush1.bf16.msra.mxu0 0
        %1024 = vmatprep.subr.bf16.mxu0 0
        %1025 = vmatpush1.bf16.msra.mxu0 0
        %1026 = vmatprep.subr.bf16.mxu0 0
        %1027 = vmatpush1.bf16.msra.mxu0 0
        %1028 = vmatprep.mubr.bf16.mxu0 0
        %1029 = vmatmul.mubr.bf16.gmra.mrb[0].mxu0 %v493
        %v1030 = vpop.f32.mrb[0].mxu0
        %v1031 = vadd.f32 0.0, %v1030
        %v1032 = vpop.f32.mrb[0].mxu0
        %v1033 = vpop.f32.mrb[0].mxu0
        %v1034 = vpop.f32.mrb[0].mxu0
        %1035 = vdwg.mxu0
        %v1037 = vsel %vm310, %v818, 0
        %1039 = vmatprep.subr.bf16.mxu0 0
        %1040 = vmatpush1.bf16.msra.mxu0 %v1037
        %1041 = vmatprep.subr.bf16.mxu0 0
        %1042 = vmatpush1.bf16.msra.mxu0 0
        %1043 = vmatprep.subr.bf16.mxu0 0
        %1044 = vmatpush1.bf16.msra.mxu0 0
        %1045 = vmatprep.subr.bf16.mxu0 0
        %1046 = vmatpush1.bf16.msra.mxu0 0
        %1047 = vmatprep.subr.bf16.mxu0 0
        %1048 = vmatpush1.bf16.msra.mxu0 0
        %1049 = vmatprep.subr.bf16.mxu0 0
        %1050 = vmatpush1.bf16.msra.mxu0 0
        %1051 = vmatprep.subr.bf16.mxu0 0
        %1052 = vmatpush1.bf16.msra.mxu0 0
        %1053 = vmatprep.subr.bf16.mxu0 0
        %1054 = vmatpush1.bf16.msra.mxu0 0
        %1055 = vmatprep.subr.bf16.mxu0 0
        %1056 = vmatpush1.bf16.msra.mxu0 0
        %1057 = vmatprep.subr.bf16.mxu0 0
        %1058 = vmatpush1.bf16.msra.mxu0 0
        %1059 = vmatprep.subr.bf16.mxu0 0
        %1060 = vmatpush1.bf16.msra.mxu0 0
        %1061 = vmatprep.subr.bf16.mxu0 0
        %1062 = vmatpush1.bf16.msra.mxu0 0
        %1063 = vmatprep.subr.bf16.mxu0 0
        %1064 = vmatpush1.bf16.msra.mxu0 0
        %1065 = vmatprep.subr.bf16.mxu0 0
        %1066 = vmatpush1.bf16.msra.mxu0 0
        %1067 = vmatprep.subr.bf16.mxu0 0
        %1068 = vmatpush1.bf16.msra.mxu0 0
        %1069 = vmatprep.subr.bf16.mxu0 0
        %1070 = vmatpush1.bf16.msra.mxu0 0
        %1071 = vmatprep.mubr.bf16.mxu0 0
        %1072 = vmatmul.mubr.bf16.gmra.mrb[0].mxu0 %v539
        %v1073 = vpop.f32.mrb[0].mxu0
        %v1074 = vadd.f32 0.0, %v1073
        %v1075 = vpop.f32.mrb[0].mxu0
        %v1076 = vpop.f32.mrb[0].mxu0
        %v1077 = vpop.f32.mrb[0].mxu0
        %1078 = vdwg.mxu0
        %v1080 = vsel %vm310, %v819, 0
        %1082 = vmatprep.subr.bf16.mxu0 0
        %1083 = vmatpush1.bf16.msra.mxu0 %v1080
        %1084 = vmatprep.subr.bf16.mxu0 0
        %1085 = vmatpush1.bf16.msra.mxu0 0
        %1086 = vmatprep.subr.bf16.mxu0 0
        %1087 = vmatpush1.bf16.msra.mxu0 0
        %1088 = vmatprep.subr.bf16.mxu0 0
        %1089 = vmatpush1.bf16.msra.mxu0 0
        %1090 = vmatprep.subr.bf16.mxu0 0
        %1091 = vmatpush1.bf16.msra.mxu0 0
        %1092 = vmatprep.subr.bf16.mxu0 0
        %1093 = vmatpush1.bf16.msra.mxu0 0
        %1094 = vmatprep.subr.bf16.mxu0 0
        %1095 = vmatpush1.bf16.msra.mxu0 0
        %1096 = vmatprep.subr.bf16.mxu0 0
        %1097 = vmatpush1.bf16.msra.mxu0 0
        %1098 = vmatprep.subr.bf16.mxu0 0
        %1099 = vmatpush1.bf16.msra.mxu0 0
        %1100 = vmatprep.subr.bf16.mxu0 0
        %1101 = vmatpush1.bf16.msra.mxu0 0
        %1102 = vmatprep.subr.bf16.mxu0 0
        %1103 = vmatpush1.bf16.msra.mxu0 0
        %1104 = vmatprep.subr.bf16.mxu0 0
        %1105 = vmatpush1.bf16.msra.mxu0 0
        %1106 = vmatprep.subr.bf16.mxu0 0
        %1107 = vmatpush1.bf16.msra.mxu0 0
        %1108 = vmatprep.subr.bf16.mxu0 0
        %1109 = vmatpush1.bf16.msra.mxu0 0
        %1110 = vmatprep.subr.bf16.mxu0 0
        %1111 = vmatpush1.bf16.msra.mxu0 0
        %1112 = vmatprep.subr.bf16.mxu0 0
        %1113 = vmatpush1.bf16.msra.mxu0 0
        %1114 = vmatprep.mubr.bf16.mxu0 0
        %1115 = vmatmul.mubr.bf16.gmra.mrb[0].mxu0 %v585
        %v1116 = vpop.f32.mrb[0].mxu0
        %v1117 = vadd.f32 0.0, %v1116
        %v1118 = vpop.f32.mrb[0].mxu0
        %v1119 = vpop.f32.mrb[0].mxu0
        %v1120 = vpop.f32.mrb[0].mxu0
        %1121 = vdwg.mxu0
        %v1123 = vsel %vm310, %v820, 0
        %1125 = vmatprep.subr.bf16.mxu0 0
        %1126 = vmatpush1.bf16.msra.mxu0 %v1123
        %1127 = vmatprep.subr.bf16.mxu0 0
        %1128 = vmatpush1.bf16.msra.mxu0 0
        %1129 = vmatprep.subr.bf16.mxu0 0
        %1130 = vmatpush1.bf16.msra.mxu0 0
        %1131 = vmatprep.subr.bf16.mxu0 0
        %1132 = vmatpush1.bf16.msra.mxu0 0
        %1133 = vmatprep.subr.bf16.mxu0 0
        %1134 = vmatpush1.bf16.msra.mxu0 0
        %1135 = vmatprep.subr.bf16.mxu0 0
        %1136 = vmatpush1.bf16.msra.mxu0 0
        %1137 = vmatprep.subr.bf16.mxu0 0
        %1138 = vmatpush1.bf16.msra.mxu0 0
        %1139 = vmatprep.subr.bf16.mxu0 0
        %1140 = vmatpush1.bf16.msra.mxu0 0
        %1141 = vmatprep.subr.bf16.mxu0 0
        %1142 = vmatpush1.bf16.msra.mxu0 0
        %1143 = vmatprep.subr.bf16.mxu0 0
        %1144 = vmatpush1.bf16.msra.mxu0 0
        %1145 = vmatprep.subr.bf16.mxu0 0
        %1146 = vmatpush1.bf16.msra.mxu0 0
        %1147 = vmatprep.subr.bf16.mxu0 0
        %1148 = vmatpush1.bf16.msra.mxu0 0
        %1149 = vmatprep.subr.bf16.mxu0 0
        %1150 = vmatpush1.bf16.msra.mxu0 0
        %1151 = vmatprep.subr.bf16.mxu0 0
        %1152 = vmatpush1.bf16.msra.mxu0 0
        %1153 = vmatprep.subr.bf16.mxu0 0
        %1154 = vmatpush1.bf16.msra.mxu0 0
        %1155 = vmatprep.subr.bf16.mxu0 0
        %1156 = vmatpush1.bf16.msra.mxu0 0
        %1157 = vmatprep.mubr.bf16.mxu0 0
        %1158 = vmatmul.mubr.bf16.gmra.mrb[0].mxu0 %v631
        %v1159 = vpop.f32.mrb[0].mxu0
        %v1160 = vadd.f32 0.0, %v1159
        %v1161 = vpop.f32.mrb[0].mxu0
        %v1162 = vpop.f32.mrb[0].mxu0
        %v1163 = vpop.f32.mrb[0].mxu0
        %1164 = vdwg.mxu0
        %v1165 = vpack.c.bf16 %v859, %v859
        %v1166 = vpack.c.bf16 %v902, %v902
        %v1167 = vpack.c.bf16 %v945, %v945
        %v1168 = vpack.c.bf16 %v988, %v988
        %v1169 = vpack.c.bf16 %v1031, %v1031
        %v1170 = vpack.c.bf16 %v1074, %v1074
        %v1171 = vpack.c.bf16 %v1117, %v1117
        %v1172 = vpack.c.bf16 %v1160, %v1160
        %v1173 = vld [vmem:[#allocation2] sm:$0xf]
        %v1174 = vld [vmem:[#allocation2 + $0x4] sm:$0xf]
        %v1175 = vld [vmem:[#allocation2 + $0x8] sm:$0xf]
        %v1176 = vld [vmem:[#allocation2 + $0xc] sm:$0xf]
        %v1177 = vld [vmem:[#allocation2 + $0x10] sm:$0xf]
        %v1178 = vld [vmem:[#allocation2 + $0x14] sm:$0xf]
        %v1179 = vld [vmem:[#allocation2 + $0x18] sm:$0xf]
        %v1180 = vld [vmem:[#allocation2 + $0x1c] sm:$0xf]
        %v1181 = vld [vmem:[#allocation2 + $0x20] sm:$0xf]
        %v1182 = vld [vmem:[#allocation2 + $0x24] sm:$0xf]
        %v1183 = vld [vmem:[#allocation2 + $0x28] sm:$0xf]
        %v1184 = vld [vmem:[#allocation2 + $0x2c] sm:$0xf]
        %v1185 = vld [vmem:[#allocation2 + $0x30] sm:$0xf]
        %v1186 = vld [vmem:[#allocation2 + $0x34] sm:$0xf]
        %v1187 = vld [vmem:[#allocation2 + $0x38] sm:$0xf]
        %v1188 = vld [vmem:[#allocation2 + $0x3c] sm:$0xf]
        %v1189 = vld [vmem:[%s5] sm:$0x1]
        %v1191 = vlaneseq
        %v1192 = vshrl.u32 %v1191, 7
        %v1193 = vsub.s32 0, %v1192
        %v1194 = vrot.slane %v1189, %v1193
        %v1204 = vunpack.c.l.b16 %v1165
        %v1205 = vunpack.c.l.b16 %v1166
        %v1206 = vunpack.c.l.b16 %v1167
        %v1207 = vunpack.c.l.b16 %v1168
        %v1208 = vunpack.c.l.b16 %v1169
        %v1209 = vunpack.c.l.b16 %v1170
        %v1210 = vunpack.c.l.b16 %v1171
        %v1211 = vunpack.c.l.b16 %v1172
        %v1212 = vpack.c.b16 %v1205, %v1204
        %v1213 = vpack.c.b16 %v1207, %v1206
        %v1214 = vpack.c.b16 %v1209, %v1208
        %v1215 = vpack.c.b16 %v1211, %v1210
        %v1236 = vunpack.c.l.b16 %v1173
        %v1237 = vunpack.c.l.b16 %v1174
        %v1238 = vunpack.c.l.b16 %v1175
        %v1239 = vunpack.c.l.b16 %v1176
        %v1240 = vunpack.c.l.b16 %v1177
        %v1241 = vunpack.c.l.b16 %v1178
        %v1242 = vunpack.c.l.b16 %v1179
        %v1243 = vunpack.c.l.b16 %v1180
        %v1244 = vunpack.c.l.b16 %v1181
        %v1245 = vunpack.c.l.b16 %v1182
        %v1246 = vunpack.c.l.b16 %v1183
        %v1247 = vunpack.c.l.b16 %v1184
        %v1248 = vunpack.c.l.b16 %v1185
        %v1249 = vunpack.c.l.b16 %v1186
        %v1250 = vunpack.c.l.b16 %v1187
        %v1251 = vunpack.c.l.b16 %v1188
        %v1252 = vpack.c.b16 %v1237, %v1236
        %v1253 = vpack.c.b16 %v1239, %v1238
        %v1254 = vpack.c.b16 %v1241, %v1240
        %v1255 = vpack.c.b16 %v1243, %v1242
        %v1256 = vpack.c.b16 %v1245, %v1244
        %v1257 = vpack.c.b16 %v1247, %v1246
        %v1258 = vpack.c.b16 %v1249, %v1248
        %v1259 = vpack.c.b16 %v1251, %v1250
        %1268 = vmatprep.subr.bf16.mxu0 0
        %1269 = vmatpush1.bf16.msra.mxu0 %v1252
        %1270 = vmatprep.subr.bf16.mxu0 0
        %1271 = vmatpush1.bf16.msra.mxu0 %v1253
        %1272 = vmatprep.subr.bf16.mxu0 0
        %1273 = vmatpush1.bf16.msra.mxu0 %v1254
        %1274 = vmatprep.subr.bf16.mxu0 0
        %1275 = vmatpush1.bf16.msra.mxu0 %v1255
        %1276 = vmatprep.subr.bf16.mxu0 0
        %1277 = vmatpush1.bf16.msra.mxu0 %v1256
        %1278 = vmatprep.subr.bf16.mxu0 0
        %1279 = vmatpush1.bf16.msra.mxu0 %v1257
        %1280 = vmatprep.subr.bf16.mxu0 0
        %1281 = vmatpush1.bf16.msra.mxu0 %v1258
        %1282 = vmatprep.subr.bf16.mxu0 0
        %1283 = vmatpush1.bf16.msra.mxu0 %v1259
        %1284 = vmatprep.subr.bf16.mxu0 0
        %1285 = vmatpush1.bf16.msra.mxu0 0
        %1286 = vmatprep.subr.bf16.mxu0 0
        %1287 = vmatpush1.bf16.msra.mxu0 0
        %1288 = vmatprep.subr.bf16.mxu0 0
        %1289 = vmatpush1.bf16.msra.mxu0 0
        %1290 = vmatprep.subr.bf16.mxu0 0
        %1291 = vmatpush1.bf16.msra.mxu0 0
        %1292 = vmatprep.subr.bf16.mxu0 0
        %1293 = vmatpush1.bf16.msra.mxu0 0
        %1294 = vmatprep.subr.bf16.mxu0 0
        %1295 = vmatpush1.bf16.msra.mxu0 0
        %1296 = vmatprep.subr.bf16.mxu0 0
        %1297 = vmatpush1.bf16.msra.mxu0 0
        %1298 = vmatprep.subr.bf16.mxu0 0
        %1299 = vmatpush1.bf16.msra.mxu0 0
        %1300 = vmatprep.mubr.bf16.mxu0 0
        %1301 = vmatmul.mubr.bf16.gmra.mrb[0].mxu0 %v1212
        %v1302 = vpop.f32.mrb[0].mxu0
        %v1303 = vadd.f32 %v1194, %v1302
        %v1304 = vpop.f32.mrb[0].mxu0
        %v1305 = vpop.f32.mrb[0].mxu0
        %v1306 = vadd.f32 %v1194, %v1305
        %v1307 = vpop.f32.mrb[0].mxu0
        %1308 = vmatprep.mubr.bf16.mxu0 0
        %1309 = vmatmul.mubr.bf16.gmra.mrb[0].mxu0 %v1213
        %v1310 = vpop.f32.mrb[0].mxu0
        %v1311 = vadd.f32 %v1194, %v1310
        %v1312 = vpop.f32.mrb[0].mxu0
        %v1313 = vpop.f32.mrb[0].mxu0
        %v1314 = vadd.f32 %v1194, %v1313
        %v1315 = vpop.f32.mrb[0].mxu0
        %1316 = vmatprep.mubr.bf16.mxu0 0
        %1317 = vmatmul.mubr.bf16.gmra.mrb[0].mxu0 %v1214
        %v1318 = vpop.f32.mrb[0].mxu0
        %v1319 = vadd.f32 %v1194, %v1318
        %v1320 = vpop.f32.mrb[0].mxu0
        %v1321 = vpop.f32.mrb[0].mxu0
        %v1322 = vadd.f32 %v1194, %v1321
        %v1323 = vpop.f32.mrb[0].mxu0
        %1324 = vmatprep.mubr.bf16.mxu0 0
        %1325 = vmatmul.mubr.bf16.gmra.mrb[0].mxu0 %v1215
        %v1326 = vpop.f32.mrb[0].mxu0
        %v1327 = vadd.f32 %v1194, %v1326
        %v1328 = vpop.f32.mrb[0].mxu0
        %v1329 = vpop.f32.mrb[0].mxu0
        %v1330 = vadd.f32 %v1194, %v1329
        %v1331 = vpop.f32.mrb[0].mxu0
        %1332 = vdwg.mxu0
        %v1333 = vrot.slane %v1303, 4
        %v1334 = vadd.f32 %v1303, %v1333
        %v1335 = vrot.slane %v1334, 2
        %v1336 = vadd.f32 %v1334, %v1335
        %v1337 = vrot.slane %v1336, 1
        %v1338 = vadd.f32 %v1336, %v1337
        %v1339 = vrot.slane %v1306, 4
        %v1340 = vadd.f32 %v1306, %v1339
        %v1341 = vrot.slane %v1340, 2
        %v1342 = vadd.f32 %v1340, %v1341
        %v1343 = vrot.slane %v1342, 1
        %v1344 = vadd.f32 %v1342, %v1343
        %v1345 = vrot.slane %v1311, 4
        %v1346 = vadd.f32 %v1311, %v1345
        %v1347 = vrot.slane %v1346, 2
        %v1348 = vadd.f32 %v1346, %v1347
        %v1349 = vrot.slane %v1348, 1
        %v1350 = vadd.f32 %v1348, %v1349
        %v1351 = vrot.slane %v1314, 4
        %v1352 = vadd.f32 %v1314, %v1351
        %v1353 = vrot.slane %v1352, 2
        %v1354 = vadd.f32 %v1352, %v1353
        %v1355 = vrot.slane %v1354, 1
        %v1356 = vadd.f32 %v1354, %v1355
        %v1357 = vrot.slane %v1319, 4
        %v1358 = vadd.f32 %v1319, %v1357
        %v1359 = vrot.slane %v1358, 2
        %v1360 = vadd.f32 %v1358, %v1359
        %v1361 = vrot.slane %v1360, 1
        %v1362 = vadd.f32 %v1360, %v1361
        %v1363 = vrot.slane %v1322, 4
        %v1364 = vadd.f32 %v1322, %v1363
        %v1365 = vrot.slane %v1364, 2
        %v1366 = vadd.f32 %v1364, %v1365
        %v1367 = vrot.slane %v1366, 1
        %v1368 = vadd.f32 %v1366, %v1367
        %v1369 = vrot.slane %v1327, 4
        %v1370 = vadd.f32 %v1327, %v1369
        %v1371 = vrot.slane %v1370, 2
        %v1372 = vadd.f32 %v1370, %v1371
        %v1373 = vrot.slane %v1372, 1
        %v1374 = vadd.f32 %v1372, %v1373
        %v1375 = vrot.slane %v1330, 4
        %v1376 = vadd.f32 %v1330, %v1375
        %v1377 = vrot.slane %v1376, 2
        %v1378 = vadd.f32 %v1376, %v1377
        %v1379 = vrot.slane %v1378, 1
        %v1380 = vadd.f32 %v1378, %v1379
        %vm1389 = vcmask 1041409
        %v1390 = vsel %vm1389, %v1344, %v1338
        %vm1391 = vcmask 1042434
        %v1392 = vsel %vm1391, %v1350, %v1390
        %vm1393 = vcmask 1043459
        %v1394 = vsel %vm1393, %v1356, %v1392
        %vm1395 = vcmask 1044484
        %v1396 = vsel %vm1395, %v1362, %v1394
        %vm1397 = vcmask 1045509
        %v1398 = vsel %vm1397, %v1368, %v1396
        %vm1399 = vcmask 1046534
        %v1400 = vsel %vm1399, %v1374, %v1398
        %vm1401 = vcmask 1047559
        %v1402 = vsel %vm1401, %v1380, %v1400
        %1404 = vst [vmem:[%s276] sm:$0xff] %v1402
        %s1405 = sand.u32 %s165, 1
        %s1406 = scalar_lea.sflag [#allocation4], %s1405
        %s1407 = sand.u32 %s165, 1
        %s1408 = smul.addr %s1407, 8
        %s1409 = scalar_lea.vmem [#allocation5], %s1408
        // Predicated region
        $region49: #{tpu_custom_call.1} parent=43 // pred_check
          %p1410 = pneg %p175
        $region50: #{tpu_custom_call.1} parent=43 // pred_check_branch
          %1412 = sbr.rel (%p1410) target = $region52
        $region51: #{tpu_custom_call.1} parent=43 // pred_region
          %s1414 = ssub.s32 128, 128
          %1415 = vsyncadd %s1406, %s1414
          %s1416 = smul.addr %s21, 128
          %s1417 = scalar_lea.hbm %s6, %s1416
          %s1419 = sshll.u32 %s1409, 4
          %s1420 = int_to_ptr.vmem [resolvable:$true] %s1419
          %1422 = dma.vmem_to_hbm [thread:$0]  %s1420, 128, %s1417, %s1406
        $region52: #{tpu_custom_call.1} parent=43 // pred_fallthru
          _
      $region44: #{tpu_custom_call.1} parent=5 // pred_fallthru
        _
      %p1423 = scmp.le.s32.totalorder 2, %s16
      // Predicated region
      $region53: #{tpu_custom_call.1} parent=5 // pred_check
        %p1424 = pneg %p1423
      $region54: #{tpu_custom_call.1} parent=5 // pred_check_branch
        %1426 = sbr.rel (%p1424) target = $region56
      $region55: #{tpu_custom_call.1} parent=5 // pred_region
        %s1427 = ssub.s32 %s16, 2
        // Predicated region
        $region57: #{tpu_custom_call.1} parent=55 // pred_check
          %p1428 = pneg %p181
        $region58: #{tpu_custom_call.1} parent=55 // pred_check_branch
          %1430 = sbr.rel (%p1428) target = $region60
        $region59: #{tpu_custom_call.1} parent=55 // pred_region
          %s1431 = sand.u32 %s166, 1
          %s1432 = scalar_lea.sflag [#allocation4], %s1431
          %s1433 = sand.u32 %s166, 1
          %s1434 = smul.addr %s1433, 8
          %s1435 = scalar_lea.vmem [#allocation5], %s1434
          %1436 = dma.done %s1432, 128
        $region60: #{tpu_custom_call.1} parent=55 // pred_fallthru
          _
      $region56: #{tpu_custom_call.1} parent=5 // pred_fallthru
        _
    $region6: #{tpu_custom_call.1} parent=1 // loop_footer
      %s20 = sadd.s32 1, %s16
    $region7: #{tpu_custom_call.1} parent=1 // loop_footer_branch
      %15 = sbr.rel target = $region3
    $region8: #{tpu_custom_call.1} parent=1 // loop_exit
      _
    %1437 = vsyncpa [#allocation3], 1
    %s1438 = scalar_lea.sflag [#allocation3], 1
    %1439 = vsyncpa %s1438, 1
    %1440 = vsyncpa [#allocation4], 1
    %s1441 = scalar_lea.sflag [#allocation4], 1
    %1442 = vsyncpa %s1441, 1

</llo_original>
